<compile_context>
chip_gen: v6e
topology: v6e:2x2x1
jax: 0.10.0
libtpu: 0.0.40
codegen_flags: <defaults>
</compile_context>

<pallas_src>
from functools import partial

import jax
import jax.numpy as jnp
from jax.experimental import pallas as pl
from jax.experimental.pallas import tpu as pltpu

_LANE = 128
_SUBLANE = 8


# ---------------------------------------------------------------------------
# Kernels
# ---------------------------------------------------------------------------

def _se_kernel_pooled_matmul(x_ref, p_ref, w1t_ref, b1_ref, w2t_ref, b2_ref,
                             out_ref, *, inv_hw):
    """Small-spatial fast path.

    x_ref: (bn, C*HW) lane-dense flattened images (long DMA rows).
    p_ref: (C*HW, C)  0/1 pooling matrix (x.dtype) -> average pool == matmul.
    """
    s = jnp.dot(x_ref[...], p_ref[...],
                preferred_element_type=jnp.float32) * inv_hw          # (bn, C)
    h = jnp.dot(s, w1t_ref[...], preferred_element_type=jnp.float32)
    h = jnp.maximum(h + b1_ref[...], 0.0)                             # (bn, Ch)
    o = jnp.dot(h, w2t_ref[...], preferred_element_type=jnp.float32)
    out_ref[...] = jax.nn.sigmoid(o + b2_ref[...]).astype(out_ref.dtype)


def _se_kernel_hw_tiled(x_ref, w1t_ref, b1_ref, w2t_ref, b2_ref, out_ref,
                        acc_ref, *, hw, hw_t, inv_hw):
    """General path: x_ref is a (bn, C, hw_t) slice of the (N, C, HW) tensor.

    HW is the last ("arbitrary") grid axis; pooled sums accumulate in an f32
    VMEM scratch; the excitation MLP + store run only on the last HW step.
    """
    j = pl.program_id(1)

    @pl.when(j == 0)
    def _init():
        acc_ref[...] = jnp.zeros_like(acc_ref)

    x = x_ref[...]                                                    # (bn, C, hw_t)
    if hw % hw_t != 0:
        # Partial last HW tile: zero out-of-range lanes before reducing.
        lanes = jax.lax.broadcasted_iota(jnp.int32, x.shape, dimension=2)
        x = jnp.where(lanes + j * hw_t < hw, x, jnp.zeros((), x.dtype))
    # Reduce over spatial lanes, accumulating in f32 (no eager f32 tile copy).
    acc_ref[...] += jnp.sum(x, axis=-1, dtype=jnp.float32)

    @pl.when(j == pl.num_programs(1) - 1)
    def _finalize():
        s = acc_ref[...] * inv_hw                                     # (bn, C)
        h = jnp.dot(s, w1t_ref[...], preferred_element_type=jnp.float32)
        h = jnp.maximum(h + b1_ref[...], 0.0)
        o = jnp.dot(h, w2t_ref[...], preferred_element_type=jnp.float32)
        out_ref[...] = jax.nn.sigmoid(o + b2_ref[...]).astype(out_ref.dtype)


# ---------------------------------------------------------------------------
# Host-side planning
# ---------------------------------------------------------------------------

def _round_up(v, m):
    return ((v + m - 1) // m) * m


def _chip_profile():
    """Per-generation X-tile / VMEM budgets and megacore step requirement."""
    kind = ""
    try:
        kind = jax.devices()[0].device_kind.lower()
    except Exception:
        pass
    if "7" in kind:      # v7x: 64 MiB VMEM per TensorCore, 2 TCs, ~3.2 TB/s HBM
        return {"tile_bytes": 12 << 20, "vmem_limit": 48 << 20, "min_steps": 2}
    if "v6" in kind:     # v6e: 128 MiB VMEM, single TC -> biggest tile that fits
        return {"tile_bytes": 16 << 20, "vmem_limit": 64 << 20, "min_steps": 1}
    if "v5" in kind:     # v5e: 128 MiB VMEM, ~820 GB/s -> 8 MiB tiles suffice
        return {"tile_bytes": 8 << 20, "vmem_limit": 40 << 20, "min_steps": 1}
    # Unknown chip: conservative (fits a v7x core's VMEM, assumes 2 cores).
    return {"tile_bytes": 8 << 20, "vmem_limit": 40 << 20, "min_steps": 2}


def _choose_bn(n, per_img_bytes, tile_bytes, min_steps):
    """Batch rows per grid step (sublane-aligned whenever the batch is tiled)."""
    bn = max(1, int(tile_bytes // max(per_img_bytes, 1)))
    bn = min(bn, n)
    if min_steps >= 2 and n > _SUBLANE:
        # Megacore (v7x): guarantee >= 2 batch grid steps so both TCs work.
        bn = min(bn, _round_up(pl.cdiv(n, 2), _SUBLANE))
    if bn < n:
        # Tiled batch axis -> output block sublane dim must be a multiple of 8.
        # (For extreme channel counts this can overshoot the tile budget; the
        # wrapper bumps vmem_limit_bytes to cover it.)
        bn = max(_SUBLANE, (bn // _SUBLANE) * _SUBLANE)
    return bn


# ---------------------------------------------------------------------------
# Forward wrapper
# ---------------------------------------------------------------------------

@partial(jax.jit, static_argnames=("max_tile_bytes",))
def se_block_forward(x_nchw, w1, b1, w2, b2, *, max_tile_bytes=None):
    """SEBlock.forward: returns the sigmoid gate, shape (N, C, 1, 1).

    x_nchw: (N, C, H, W); w1: (Ch, C); b1: (Ch,)/(Ch,1); w2: (C, Ch); b2: (C,)/(C,1).
    Output dtype follows x (bf16 in -> bf16 gate).
    """
    N, C, H, W = x_nchw.shape
    Ch = w1.shape[0]
    hw = H * W
    itemsize = x_nchw.dtype.itemsize

    prof = _chip_profile()
    tile_bytes = int(max_tile_bytes) if max_tile_bytes else prof["tile_bytes"]
    vmem_limit = prof["vmem_limit"]

    # Lane-dense excitation weights: contract over C / Ch, channels on lanes.
    w1t = w1.T                               # (C, Ch)
    w2t = w2.T                               # (Ch, C)
    b1r = b1.reshape(1, Ch)
    b2r = b2.reshape(1, C)
    inv_hw = 1.0 / float(hw)

    c_pad = _round_up(C, _SUBLANE)
    k_flat = C * hw
    p_bytes = _round_up(k_flat, _SUBLANE) * _round_up(C, _LANE) * itemsize
    use_flat = (hw < _LANE) and (p_bytes <= min(2 << 20, tile_bytes // 4))

    if use_flat:
        # --- small-spatial fast path: (N, C*HW) stream + matmul pooling -----
        per_img = _round_up(k_flat, _LANE) * itemsize
        bn = _choose_bn(N, per_img, tile_bytes - 2 * p_bytes, prof["min_steps"])
        grid_n = pl.cdiv(N, bn)
        n_out = grid_n * bn
        pool = jnp.repeat(jnp.eye(C, dtype=x_nchw.dtype), hw, axis=0)  # (C*HW, C)
        x_in = x_nchw.reshape(N, k_flat)      # free, contiguous reshape
        kernel = partial(_se_kernel_pooled_matmul, inv_hw=inv_hw)
        grid_spec = pltpu.PrefetchScalarGridSpec(
            num_scalar_prefetch=0,
            grid=(grid_n,),
            in_specs=[
                pl.BlockSpec((bn, k_flat), lambda i: (i, 0)),
                pl.BlockSpec((k_flat, C), lambda i: (0, 0)),
                pl.BlockSpec((C, Ch), lambda i: (0, 0)),
                pl.BlockSpec((1, Ch), lambda i: (0, 0)),
                pl.BlockSpec((Ch, C), lambda i: (0, 0)),
                pl.BlockSpec((1, C), lambda i: (0, 0)),
            ],
            out_specs=pl.BlockSpec((bn, C), lambda i: (i, 0)),
        )
        args = (x_in, pool, w1t, b1r, w2t, b2r)
        dim_sem = ("parallel",)
        tile_vmem = bn * _round_up(k_flat, _LANE) * itemsize
        extras = 2 * p_bytes + (4 << 20)
    else:
        # --- general path: (bn, C, hw_t) blocks; split HW when needed -------
        lane_hw = _round_up(hw, _LANE)
        hw_t = hw
        if _SUBLANE * c_pad * lane_hw * itemsize > tile_bytes:
            # Even a minimal (8-row) batch tile of the full-HW slab won't fit:
            # tile the HW axis in lane-aligned chunks and accumulate.
            max_lanes = (tile_bytes // (_SUBLANE * c_pad * itemsize)) // _LANE * _LANE
            hw_t = int(min(lane_hw, max(_LANE, max_lanes)))
        grid_hw = pl.cdiv(hw, hw_t)
        per_img = c_pad * _round_up(hw_t, _LANE) * itemsize
        bn = _choose_bn(N, per_img, tile_bytes, prof["min_steps"])
        grid_n = pl.cdiv(N, bn)
        n_out = grid_n * bn
        x_in = x_nchw.reshape(N, C, hw)       # free, contiguous reshape
        kernel = partial(_se_kernel_hw_tiled, hw=hw, hw_t=hw_t, inv_hw=inv_hw)
        grid_spec = pltpu.PrefetchScalarGridSpec(
            num_scalar_prefetch=0,
            grid=(grid_n, grid_hw),
            in_specs=[
                pl.BlockSpec((bn, C, hw_t), lambda i, j: (i, 0, j)),
                pl.BlockSpec((C, Ch), lambda i, j: (0, 0)),
                pl.BlockSpec((1, Ch), lambda i, j: (0, 0)),
                pl.BlockSpec((Ch, C), lambda i, j: (0, 0)),
                pl.BlockSpec((1, C), lambda i, j: (0, 0)),
            ],
            out_specs=pl.BlockSpec((bn, C), lambda i, j: (i, 0)),
            scratch_shapes=[pltpu.VMEM((bn, C), jnp.float32)],
        )
        args = (x_in, w1t, b1r, w2t, b2r)
        dim_sem = ("parallel", "arbitrary")
        tile_vmem = bn * per_img
        extras = 4 << 20

    # Ensure two pipeline buffers of the X tile plus weights/acc/out fit.
    vmem_limit = int(max(vmem_limit, 2 * tile_vmem + extras))

    cost = pl.CostEstimate(
        flops=int(N * C * hw + 4 * N * C * Ch),
        transcendentals=int(N * C),
        bytes_accessed=int(N * C * hw * itemsize + N * C * itemsize
                           + 2 * C * Ch * itemsize),
    )

    out = pl.pallas_call(
        kernel,
        out_shape=jax.ShapeDtypeStruct((n_out, C), x_nchw.dtype),
        grid_spec=grid_spec,
        compiler_params=pltpu.CompilerParams(
            dimension_semantics=dim_sem,
            vmem_limit_bytes=vmem_limit,
        ),
        cost_estimate=cost,
    )(*args)

    if n_out != N:
        out = out[:N]   # rows >= N came from the partial last batch block
    return out.reshape(N, C, 1, 1)


# ---------------------------------------------------------------------------
# Reference + demo
# ---------------------------------------------------------------------------

def _init_params(key, n_features, reduction):
    """Deterministic params matching nn.Conv2d(kernel_size=1) shapes (squeezed)."""
    assert n_features % reduction == 0
    hidden = n_features // reduction
    k1, k2, k3, k4 = jax.random.split(key, 4)
    bnd1 = 1.0 / jnp.sqrt(n_features)
    bnd2 = 1.0 / jnp.sqrt(hidden)
    w1 = jax.random.uniform(k1, (hidden, n_features), jnp.float32, -bnd1, bnd1)
    b1 = jax.random.uniform(k2, (hidden, 1), jnp.float32, -bnd1, bnd1)
    w2 = jax.random.uniform(k3, (n_features, hidden), jnp.float32, -bnd2, bnd2)
    b2 = jax.random.uniform(k4, (n_features, 1), jnp.float32, -bnd2, bnd2)
    return w1, b1, w2, b2


def _reference(x, w1, b1, w2, b2):
    s = jnp.mean(x, axis=(2, 3))                       # (N, C)
    h = jnp.maximum(s @ w1.T + b1[:, 0], 0.0)          # (N, Ch)
    o = jax.nn.sigmoid(h @ w2.T + b2[:, 0])            # (N, C)
    return o[:, :, None, None]


def _check(x, params, **kw):
    out = jax.block_until_ready(se_block_forward(x, *params, **kw))
    ref = _reference(x, *params)
    assert out.shape == ref.shape
    assert jnp.allclose(out, ref, atol=1e-4, rtol=1e-4), (
        f"mismatch: max abs err {jnp.max(jnp.abs(out - ref))}")
    return out


if __name__ == "__main__":
    n_features, reduction = 32, 4
    key = jax.random.PRNGKey(0)
    kx1, kx2, kx3, kp = jax.random.split(key, 4)
    params = _init_params(kp, n_features, reduction)

    # 1) Small spatial map (8x8) -> flattened lane-dense fast path.
    x1 = jax.random.normal(kx1, (2, n_features, 8, 8), jnp.float32)
    out = _check(x1, params)

    # 2) Larger spatial map (16x16) -> general (bn, C, HW) path, single HW step.
    x2 = jax.random.normal(kx2, (4, n_features, 16, 16), jnp.float32)
    _check(x2, params)

    # 3) Tiny forced tile budget -> exercises HW-axis split + in-kernel lane
    #    masking (HW=200 not a multiple of 128) and a partial last batch block
    #    (N=10 not a multiple of bn) with no jnp.pad of X.
    x3 = jax.random.normal(kx3, (10, n_features, 10, 20), jnp.float32)
    _check(x3, params, max_tile_bytes=64 * 1024)

    assert out.shape == (2, n_features, 1, 1)
    print("KERNEL_OK")
</pallas_src>

<mosaic_0001>
module attributes {stable_mosaic.version = 11 : i64} {
  func.func @_se_kernel_pooled_matmul(%arg0: i32, %arg1: memref<2x2048xf32, #tpu.memory_space<vmem>>, %arg2: memref<2048x32xf32, #tpu.memory_space<vmem>>, %arg3: memref<32x8xf32, #tpu.memory_space<vmem>>, %arg4: memref<1x8xf32, #tpu.memory_space<vmem>>, %arg5: memref<8x32xf32, #tpu.memory_space<vmem>>, %arg6: memref<1x32xf32, #tpu.memory_space<vmem>>, %arg7: memref<2x32xf32, #tpu.memory_space<vmem>>) attributes {dimension_semantics = [#tpu.dimension_semantics<parallel>], iteration_bounds = array<i64: 1>, scalar_prefetch = 0 : i64, scratch_operands = 0 : i64, tpu.core_type = #tpu.core_type<tc>, window_params = [{transform_indices = @transform_0, window_bounds = array<i64: 2, 2048>}, {pipeline_mode = #tpu.pipeline_mode<synchronous>, transform_indices = @transform_1, window_bounds = array<i64: 2048, 32>}, {pipeline_mode = #tpu.pipeline_mode<synchronous>, transform_indices = @transform_2, window_bounds = array<i64: 32, 8>}, {pipeline_mode = #tpu.pipeline_mode<synchronous>, transform_indices = @transform_3, window_bounds = array<i64: 1, 8>}, {pipeline_mode = #tpu.pipeline_mode<synchronous>, transform_indices = @transform_4, window_bounds = array<i64: 8, 32>}, {pipeline_mode = #tpu.pipeline_mode<synchronous>, transform_indices = @transform_5, window_bounds = array<i64: 1, 32>}, {transform_indices = @transform_6, window_bounds = array<i64: 2, 32>}]} {
    %c0 = arith.constant 0 : index
    %c0_0 = arith.constant 0 : index
    %0 = vector.load %arg1[%c0, %c0_0] : memref<2x2048xf32, #tpu.memory_space<vmem>>, vector<2x2048xf32>
    %c0_1 = arith.constant 0 : index
    %c0_2 = arith.constant 0 : index
    %1 = vector.load %arg2[%c0_1, %c0_2] : memref<2048x32xf32, #tpu.memory_space<vmem>>, vector<2048x32xf32>
    %cst = arith.constant dense<0.000000e+00> : vector<2x32xf32>
    %2 = tpu.matmul %0, %1, %cst {dimension_numbers = #tpu.dot_dimension_numbers<[1], [0], [0], [1], [0, 0, 1, 1], [], []>} : vector<2x2048xf32>, vector<2048x32xf32>, vector<2x32xf32> -> vector<2x32xf32>
    %cst_3 = arith.constant 1.562500e-02 : f32
    %3 = vector.broadcast %cst_3 : f32 to vector<2x32xf32>
    %4 = arith.mulf %2, %3 : vector<2x32xf32>
    %c0_4 = arith.constant 0 : index
    %c0_5 = arith.constant 0 : index
    %5 = vector.load %arg3[%c0_4, %c0_5] : memref<32x8xf32, #tpu.memory_space<vmem>>, vector<32x8xf32>
    %cst_6 = arith.constant dense<0.000000e+00> : vector<2x8xf32>
    %6 = tpu.matmul %4, %5, %cst_6 {dimension_numbers = #tpu.dot_dimension_numbers<[1], [0], [0], [1], [0, 0, 1, 1], [], []>} : vector<2x32xf32>, vector<32x8xf32>, vector<2x8xf32> -> vector<2x8xf32>
    %c0_7 = arith.constant 0 : index
    %c0_8 = arith.constant 0 : index
    %7 = vector.load %arg4[%c0_7, %c0_8] : memref<1x8xf32, #tpu.memory_space<vmem>>, vector<1x8xf32>
    %8 = vector.broadcast %7 : vector<1x8xf32> to vector<2x8xf32>
    %9 = arith.addf %6, %8 : vector<2x8xf32>
    %cst_9 = arith.constant 0.000000e+00 : f32
    %10 = vector.broadcast %cst_9 : f32 to vector<2x8xf32>
    %11 = arith.maximumf %9, %10 : vector<2x8xf32>
    %c0_10 = arith.constant 0 : index
    %c0_11 = arith.constant 0 : index
    %12 = vector.load %arg5[%c0_10, %c0_11] : memref<8x32xf32, #tpu.memory_space<vmem>>, vector<8x32xf32>
    %cst_12 = arith.constant dense<0.000000e+00> : vector<2x32xf32>
    %13 = tpu.matmul %11, %12, %cst_12 {dimension_numbers = #tpu.dot_dimension_numbers<[1], [0], [0], [1], [0, 0, 1, 1], [], []>} : vector<2x8xf32>, vector<8x32xf32>, vector<2x32xf32> -> vector<2x32xf32>
    %c0_13 = arith.constant 0 : index
    %c0_14 = arith.constant 0 : index
    %14 = vector.load %arg6[%c0_13, %c0_14] : memref<1x32xf32, #tpu.memory_space<vmem>>, vector<1x32xf32>
    %15 = vector.broadcast %14 : vector<1x32xf32> to vector<2x32xf32>
    %16 = arith.addf %13, %15 : vector<2x32xf32>
    %17 = arith.negf %16 : vector<2x32xf32>
    %18 = math.exp %17 : vector<2x32xf32>
    %cst_15 = arith.constant 1.000000e+00 : f32
    %19 = vector.broadcast %cst_15 : f32 to vector<2x32xf32>
    %20 = arith.addf %19, %18 : vector<2x32xf32>
    %21 = arith.divf %19, %20 : vector<2x32xf32>
    %c0_16 = arith.constant 0 : index
    %c0_17 = arith.constant 0 : index
    %22 = vector.load %arg7[%c0_16, %c0_17] : memref<2x32xf32, #tpu.memory_space<vmem>>, vector<2x32xf32>
    tpu.vector_store %arg7[%c0_16, %c0_17], %21 {strides = array<i32>} : memref<2x32xf32, #tpu.memory_space<vmem>>, vector<2x32xf32>,
    return
  }
  func.func @transform_0(%arg0: i32) -> (i32, i32) {
    %c0_i32 = arith.constant 0 : i32
    %c0_i32_0 = arith.constant 0 : i32
    return %arg0, %c0_i32 : i32, i32
  }
  func.func @transform_1(%arg0: i32) -> (i32, i32) {
    %c0_i32 = arith.constant 0 : i32
    %c0_i32_0 = arith.constant 0 : i32
    %c0_i32_1 = arith.constant 0 : i32
    return %c0_i32, %c0_i32_0 : i32, i32
  }
  func.func @transform_2(%arg0: i32) -> (i32, i32) {
    %c0_i32 = arith.constant 0 : i32
    %c0_i32_0 = arith.constant 0 : i32
    %c0_i32_1 = arith.constant 0 : i32
    return %c0_i32, %c0_i32_0 : i32, i32
  }
  func.func @transform_3(%arg0: i32) -> (i32, i32) {
    %c0_i32 = arith.constant 0 : i32
    %c0_i32_0 = arith.constant 0 : i32
    %c0_i32_1 = arith.constant 0 : i32
    return %c0_i32, %c0_i32_0 : i32, i32
  }
  func.func @transform_4(%arg0: i32) -> (i32, i32) {
    %c0_i32 = arith.constant 0 : i32
    %c0_i32_0 = arith.constant 0 : i32
    %c0_i32_1 = arith.constant 0 : i32
    return %c0_i32, %c0_i32_0 : i32, i32
  }
  func.func @transform_5(%arg0: i32) -> (i32, i32) {
    %c0_i32 = arith.constant 0 : i32
    %c0_i32_0 = arith.constant 0 : i32
    %c0_i32_1 = arith.constant 0 : i32
    return %c0_i32, %c0_i32_0 : i32, i32
  }
  func.func @transform_6(%arg0: i32) -> (i32, i32) {
    %c0_i32 = arith.constant 0 : i32
    %c0_i32_0 = arith.constant 0 : i32
    return %arg0, %c0_i32 : i32, i32
  }
}

</mosaic_0001>

<llo_original>
// kernel: se_block_forward.1
$region0: #{se_block_forward.1}
  #allocation0 [shape = 'u32[]', space=smem, size = 0x4, offset = 0x4, fixed_abs, tag = 'smem constant byte address 0x4 - core index']
  #allocation1 [shape = 'u32[144,128]{1,0:T(1,128)}', space=vmem, size = 0x12000, scoped, tag = 'internal scratch']
  %s0 = inlined_call_operand.vmem [shape: f32[2,2048], index: 0, kind: input, shape index: {}]
  %s1 = inlined_call_operand.vmem [shape: f32[2048,32], index: 1, kind: input, shape index: {}]
  %s2 = inlined_call_operand.vmem [shape: f32[32,8], index: 2, kind: input, shape index: {}]
  %s3 = inlined_call_operand.vmem [shape: f32[1,8], index: 3, kind: input, shape index: {}]
  %s4 = inlined_call_operand.vmem [shape: f32[8,32], index: 4, kind: input, shape index: {}]
  %s5 = inlined_call_operand.vmem [shape: f32[1,32], index: 5, kind: input, shape index: {}]
  %s6 = inlined_call_operand.hbm [shape: f32[2,32], index: 6, kind: output, shape index: {}]
  %s7 = sld [smem:[#allocation0]]
  $region34: #{se_block_forward.1} parent=0
    _
  %s9 = ssub.s32 1, %s7
  %s10 = scalar_select 0, %s9, %s7
  $region1: #{se_block_forward.1} parent=0
    #allocation2 [shape = 'u8[1024]{0}', space=vmem, size = 0x400, scoped, tag = 'output window, operand 0, single buffered']
    #allocation3 [shape = 's32[1]{0}', space=sflag, size = 0x4, scoped, tag = 'scoped memory for se_block_forward.1']
    %11 = vsyncpa [#allocation3], 0
    // Predicated region
    $region2: #{se_block_forward.1} parent=1 // pred_check
      _
    $region3: #{se_block_forward.1} parent=1 // pred_check_branch
      %13 = sbr.rel (0) target = $region5
    $region4: #{se_block_forward.1} parent=1 // pred_region
      _
    $region5: #{se_block_forward.1} parent=1 // pred_fallthru
      _
    // Predicated region
    $region6: #{se_block_forward.1} parent=1 // pred_check
      _
    $region7: #{se_block_forward.1} parent=1 // pred_check_branch
      %15 = sbr.rel (0) target = $region9
    $region8: #{se_block_forward.1} parent=1 // pred_region
      _
    $region9: #{se_block_forward.1} parent=1 // pred_fallthru
      _
    // Predicated region
    $region10: #{se_block_forward.1} parent=1 // pred_check
      _
    $region11: #{se_block_forward.1} parent=1 // pred_check_branch
      %17 = sbr.rel (0) target = $region13
    $region12: #{se_block_forward.1} parent=1 // pred_region
      _
    $region13: #{se_block_forward.1} parent=1 // pred_fallthru
      _
    // Predicated region
    $region14: #{se_block_forward.1} parent=1 // pred_check
      _
    $region15: #{se_block_forward.1} parent=1 // pred_check_branch
      %19 = sbr.rel (0) target = $region17
    $region16: #{se_block_forward.1} parent=1 // pred_region
      _
    $region17: #{se_block_forward.1} parent=1 // pred_fallthru
      _
    // Predicated region
    $region18: #{se_block_forward.1} parent=1 // pred_check
      _
    $region19: #{se_block_forward.1} parent=1 // pred_check_branch
      %21 = sbr.rel (0) target = $region21
    $region20: #{se_block_forward.1} parent=1 // pred_region
      _
    $region21: #{se_block_forward.1} parent=1 // pred_fallthru
      _
    // Predicated region
    $region22: #{se_block_forward.1} parent=1 // pred_check
      _
    $region23: #{se_block_forward.1} parent=1 // pred_check_branch
      %23 = sbr.rel (0) target = $region25
    $region24: #{se_block_forward.1} parent=1 // pred_region
      _
    $region25: #{se_block_forward.1} parent=1 // pred_fallthru
      _
    %v24 = vld [vmem:[%s0] sm:$0xff]
    %v25 = vld [vmem:[%s0 + $0x8] sm:$0xff]
    %v26 = vld [vmem:[%s0 + $0x10] sm:$0xff]
    %v27 = vld [vmem:[%s0 + $0x18] sm:$0xff]
    %v28 = vld [vmem:[%s1] sm:$0xff]
    %v29 = vld [vmem:[%s1 + $0x8] sm:$0xff]
    %v30 = vld [vmem:[%s1 + $0x10] sm:$0xff]
    %v31 = vld [vmem:[%s1 + $0x18] sm:$0xff]
    %v32 = vld [vmem:[%s1 + $0x20] sm:$0xff]
    %v33 = vld [vmem:[%s1 + $0x28] sm:$0xff]
    %v34 = vld [vmem:[%s1 + $0x30] sm:$0xff]
    %v35 = vld [vmem:[%s1 + $0x38] sm:$0xff]
    %v36 = vld [vmem:[%s1 + $0x40] sm:$0xff]
    %v37 = vld [vmem:[%s1 + $0x48] sm:$0xff]
    %v38 = vld [vmem:[%s1 + $0x50] sm:$0xff]
    %v39 = vld [vmem:[%s1 + $0x58] sm:$0xff]
    %v40 = vld [vmem:[%s1 + $0x60] sm:$0xff]
    %v41 = vld [vmem:[%s1 + $0x68] sm:$0xff]
    %v42 = vld [vmem:[%s1 + $0x70] sm:$0xff]
    %v43 = vld [vmem:[%s1 + $0x78] sm:$0xff]
    %v44 = vld [vmem:[%s1 + $0x80] sm:$0xff]
    %v45 = vld [vmem:[%s1 + $0x88] sm:$0xff]
    %v46 = vld [vmem:[%s1 + $0x90] sm:$0xff]
    %v47 = vld [vmem:[%s1 + $0x98] sm:$0xff]
    %v48 = vld [vmem:[%s1 + $0xa0] sm:$0xff]
    %v49 = vld [vmem:[%s1 + $0xa8] sm:$0xff]
    %v50 = vld [vmem:[%s1 + $0xb0] sm:$0xff]
    %v51 = vld [vmem:[%s1 + $0xb8] sm:$0xff]
    %v52 = vld [vmem:[%s1 + $0xc0] sm:$0xff]
    %v53 = vld [vmem:[%s1 + $0xc8] sm:$0xff]
    %v54 = vld [vmem:[%s1 + $0xd0] sm:$0xff]
    %v55 = vld [vmem:[%s1 + $0xd8] sm:$0xff]
    %v56 = vld [vmem:[%s1 + $0xe0] sm:$0xff]
    %v57 = vld [vmem:[%s1 + $0xe8] sm:$0xff]
    %v58 = vld [vmem:[%s1 + $0xf0] sm:$0xff]
    %v59 = vld [vmem:[%s1 + $0xf8] sm:$0xff]
    %v60 = vld [vmem:[%s1 + $0x100] sm:$0xff]
    %v61 = vld [vmem:[%s1 + $0x108] sm:$0xff]
    %v62 = vld [vmem:[%s1 + $0x110] sm:$0xff]
    %v63 = vld [vmem:[%s1 + $0x118] sm:$0xff]
    %v64 = vld [vmem:[%s1 + $0x120] sm:$0xff]
    %v65 = vld [vmem:[%s1 + $0x128] sm:$0xff]
    %v66 = vld [vmem:[%s1 + $0x130] sm:$0xff]
    %v67 = vld [vmem:[%s1 + $0x138] sm:$0xff]
    %v68 = vld [vmem:[%s1 + $0x140] sm:$0xff]
    %v69 = vld [vmem:[%s1 + $0x148] sm:$0xff]
    %v70 = vld [vmem:[%s1 + $0x150] sm:$0xff]
    %v71 = vld [vmem:[%s1 + $0x158] sm:$0xff]
    %v72 = vld [vmem:[%s1 + $0x160] sm:$0xff]
    %v73 = vld [vmem:[%s1 + $0x168] sm:$0xff]
    %v74 = vld [vmem:[%s1 + $0x170] sm:$0xff]
    %v75 = vld [vmem:[%s1 + $0x178] sm:$0xff]
    %v76 = vld [vmem:[%s1 + $0x180] sm:$0xff]
    %v77 = vld [vmem:[%s1 + $0x188] sm:$0xff]
    %v78 = vld [vmem:[%s1 + $0x190] sm:$0xff]
    %v79 = vld [vmem:[%s1 + $0x198] sm:$0xff]
    %v80 = vld [vmem:[%s1 + $0x1a0] sm:$0xff]
    %v81 = vld [vmem:[%s1 + $0x1a8] sm:$0xff]
    %v82 = vld [vmem:[%s1 + $0x1b0] sm:$0xff]
    %v83 = vld [vmem:[%s1 + $0x1b8] sm:$0xff]
    %v84 = vld [vmem:[%s1 + $0x1c0] sm:$0xff]
    %v85 = vld [vmem:[%s1 + $0x1c8] sm:$0xff]
    %v86 = vld [vmem:[%s1 + $0x1d0] sm:$0xff]
    %v87 = vld [vmem:[%s1 + $0x1d8] sm:$0xff]
    %v88 = vld [vmem:[%s1 + $0x1e0] sm:$0xff]
    %v89 = vld [vmem:[%s1 + $0x1e8] sm:$0xff]
    %v90 = vld [vmem:[%s1 + $0x1f0] sm:$0xff]
    %v91 = vld [vmem:[%s1 + $0x1f8] sm:$0xff]
    %v92 = vld [vmem:[%s1 + $0x200] sm:$0xff]
    %v93 = vld [vmem:[%s1 + $0x208] sm:$0xff]
    %v94 = vld [vmem:[%s1 + $0x210] sm:$0xff]
    %v95 = vld [vmem:[%s1 + $0x218] sm:$0xff]
    %v96 = vld [vmem:[%s1 + $0x220] sm:$0xff]
    %v97 = vld [vmem:[%s1 + $0x228] sm:$0xff]
    %v98 = vld [vmem:[%s1 + $0x230] sm:$0xff]
    %v99 = vld [vmem:[%s1 + $0x238] sm:$0xff]
    %v100 = vld [vmem:[%s1 + $0x240] sm:$0xff]
    %v101 = vld [vmem:[%s1 + $0x248] sm:$0xff]
    %v102 = vld [vmem:[%s1 + $0x250] sm:$0xff]
    %v103 = vld [vmem:[%s1 + $0x258] sm:$0xff]
    %v104 = vld [vmem:[%s1 + $0x260] sm:$0xff]
    %v105 = vld [vmem:[%s1 + $0x268] sm:$0xff]
    %v106 = vld [vmem:[%s1 + $0x270] sm:$0xff]
    %v107 = vld [vmem:[%s1 + $0x278] sm:$0xff]
    %v108 = vld [vmem:[%s1 + $0x280] sm:$0xff]
    %v109 = vld [vmem:[%s1 + $0x288] sm:$0xff]
    %v110 = vld [vmem:[%s1 + $0x290] sm:$0xff]
    %v111 = vld [vmem:[%s1 + $0x298] sm:$0xff]
    %v112 = vld [vmem:[%s1 + $0x2a0] sm:$0xff]
    %v113 = vld [vmem:[%s1 + $0x2a8] sm:$0xff]
    %v114 = vld [vmem:[%s1 + $0x2b0] sm:$0xff]
    %v115 = vld [vmem:[%s1 + $0x2b8] sm:$0xff]
    %v116 = vld [vmem:[%s1 + $0x2c0] sm:$0xff]
    %v117 = vld [vmem:[%s1 + $0x2c8] sm:$0xff]
    %v118 = vld [vmem:[%s1 + $0x2d0] sm:$0xff]
    %v119 = vld [vmem:[%s1 + $0x2d8] sm:$0xff]
    %v120 = vld [vmem:[%s1 + $0x2e0] sm:$0xff]
    %v121 = vld [vmem:[%s1 + $0x2e8] sm:$0xff]
    %v122 = vld [vmem:[%s1 + $0x2f0] sm:$0xff]
    %v123 = vld [vmem:[%s1 + $0x2f8] sm:$0xff]
    %v124 = vld [vmem:[%s1 + $0x300] sm:$0xff]
    %v125 = vld [vmem:[%s1 + $0x308] sm:$0xff]
    %v126 = vld [vmem:[%s1 + $0x310] sm:$0xff]
    %v127 = vld [vmem:[%s1 + $0x318] sm:$0xff]
    %v128 = vld [vmem:[%s1 + $0x320] sm:$0xff]
    %v129 = vld [vmem:[%s1 + $0x328] sm:$0xff]
    %v130 = vld [vmem:[%s1 + $0x330] sm:$0xff]
    %v131 = vld [vmem:[%s1 + $0x338] sm:$0xff]
    %v132 = vld [vmem:[%s1 + $0x340] sm:$0xff]
    %v133 = vld [vmem:[%s1 + $0x348] sm:$0xff]
    %v134 = vld [vmem:[%s1 + $0x350] sm:$0xff]
    %v135 = vld [vmem:[%s1 + $0x358] sm:$0xff]
    %v136 = vld [vmem:[%s1 + $0x360] sm:$0xff]
    %v137 = vld [vmem:[%s1 + $0x368] sm:$0xff]
    %v138 = vld [vmem:[%s1 + $0x370] sm:$0xff]
    %v139 = vld [vmem:[%s1 + $0x378] sm:$0xff]
    %v140 = vld [vmem:[%s1 + $0x380] sm:$0xff]
    %v141 = vld [vmem:[%s1 + $0x388] sm:$0xff]
    %v142 = vld [vmem:[%s1 + $0x390] sm:$0xff]
    %v143 = vld [vmem:[%s1 + $0x398] sm:$0xff]
    %v144 = vld [vmem:[%s1 + $0x3a0] sm:$0xff]
    %v145 = vld [vmem:[%s1 + $0x3a8] sm:$0xff]
    %v146 = vld [vmem:[%s1 + $0x3b0] sm:$0xff]
    %v147 = vld [vmem:[%s1 + $0x3b8] sm:$0xff]
    %v148 = vld [vmem:[%s1 + $0x3c0] sm:$0xff]
    %v149 = vld [vmem:[%s1 + $0x3c8] sm:$0xff]
    %v150 = vld [vmem:[%s1 + $0x3d0] sm:$0xff]
    %v151 = vld [vmem:[%s1 + $0x3d8] sm:$0xff]
    %v152 = vld [vmem:[%s1 + $0x3e0] sm:$0xff]
    %v153 = vld [vmem:[%s1 + $0x3e8] sm:$0xff]
    %v154 = vld [vmem:[%s1 + $0x3f0] sm:$0xff]
    %v155 = vld [vmem:[%s1 + $0x3f8] sm:$0xff]
    %v156 = vld [vmem:[%s1 + $0x400] sm:$0xff]
    %v157 = vld [vmem:[%s1 + $0x408] sm:$0xff]
    %v158 = vld [vmem:[%s1 + $0x410] sm:$0xff]
    %v159 = vld [vmem:[%s1 + $0x418] sm:$0xff]
    %v160 = vld [vmem:[%s1 + $0x420] sm:$0xff]
    %v161 = vld [vmem:[%s1 + $0x428] sm:$0xff]
    %v162 = vld [vmem:[%s1 + $0x430] sm:$0xff]
    %v163 = vld [vmem:[%s1 + $0x438] sm:$0xff]
    %v164 = vld [vmem:[%s1 + $0x440] sm:$0xff]
    %v165 = vld [vmem:[%s1 + $0x448] sm:$0xff]
    %v166 = vld [vmem:[%s1 + $0x450] sm:$0xff]
    %v167 = vld [vmem:[%s1 + $0x458] sm:$0xff]
    %v168 = vld [vmem:[%s1 + $0x460] sm:$0xff]
    %v169 = vld [vmem:[%s1 + $0x468] sm:$0xff]
    %v170 = vld [vmem:[%s1 + $0x470] sm:$0xff]
    %v171 = vld [vmem:[%s1 + $0x478] sm:$0xff]
    %v172 = vld [vmem:[%s1 + $0x480] sm:$0xff]
    %v173 = vld [vmem:[%s1 + $0x488] sm:$0xff]
    %v174 = vld [vmem:[%s1 + $0x490] sm:$0xff]
    %v175 = vld [vmem:[%s1 + $0x498] sm:$0xff]
    %v176 = vld [vmem:[%s1 + $0x4a0] sm:$0xff]
    %v177 = vld [vmem:[%s1 + $0x4a8] sm:$0xff]
    %v178 = vld [vmem:[%s1 + $0x4b0] sm:$0xff]
    %v179 = vld [vmem:[%s1 + $0x4b8] sm:$0xff]
    %v180 = vld [vmem:[%s1 + $0x4c0] sm:$0xff]
    %v181 = vld [vmem:[%s1 + $0x4c8] sm:$0xff]
    %v182 = vld [vmem:[%s1 + $0x4d0] sm:$0xff]
    %v183 = vld [vmem:[%s1 + $0x4d8] sm:$0xff]
    %v184 = vld [vmem:[%s1 + $0x4e0] sm:$0xff]
    %v185 = vld [vmem:[%s1 + $0x4e8] sm:$0xff]
    %v186 = vld [vmem:[%s1 + $0x4f0] sm:$0xff]
    %v187 = vld [vmem:[%s1 + $0x4f8] sm:$0xff]
    %v188 = vld [vmem:[%s1 + $0x500] sm:$0xff]
    %v189 = vld [vmem:[%s1 + $0x508] sm:$0xff]
    %v190 = vld [vmem:[%s1 + $0x510] sm:$0xff]
    %v191 = vld [vmem:[%s1 + $0x518] sm:$0xff]
    %v192 = vld [vmem:[%s1 + $0x520] sm:$0xff]
    %v193 = vld [vmem:[%s1 + $0x528] sm:$0xff]
    %v194 = vld [vmem:[%s1 + $0x530] sm:$0xff]
    %v195 = vld [vmem:[%s1 + $0x538] sm:$0xff]
    %v196 = vld [vmem:[%s1 + $0x540] sm:$0xff]
    %v197 = vld [vmem:[%s1 + $0x548] sm:$0xff]
    %v198 = vld [vmem:[%s1 + $0x550] sm:$0xff]
    %v199 = vld [vmem:[%s1 + $0x558] sm:$0xff]
    %v200 = vld [vmem:[%s1 + $0x560] sm:$0xff]
    %v201 = vld [vmem:[%s1 + $0x568] sm:$0xff]
    %v202 = vld [vmem:[%s1 + $0x570] sm:$0xff]
    %v203 = vld [vmem:[%s1 + $0x578] sm:$0xff]
    %v204 = vld [vmem:[%s1 + $0x580] sm:$0xff]
    %v205 = vld [vmem:[%s1 + $0x588] sm:$0xff]
    %v206 = vld [vmem:[%s1 + $0x590] sm:$0xff]
    %v207 = vld [vmem:[%s1 + $0x598] sm:$0xff]
    %v208 = vld [vmem:[%s1 + $0x5a0] sm:$0xff]
    %v209 = vld [vmem:[%s1 + $0x5a8] sm:$0xff]
    %v210 = vld [vmem:[%s1 + $0x5b0] sm:$0xff]
    %v211 = vld [vmem:[%s1 + $0x5b8] sm:$0xff]
    %v212 = vld [vmem:[%s1 + $0x5c0] sm:$0xff]
    %v213 = vld [vmem:[%s1 + $0x5c8] sm:$0xff]
    %v214 = vld [vmem:[%s1 + $0x5d0] sm:$0xff]
    %v215 = vld [vmem:[%s1 + $0x5d8] sm:$0xff]
    %v216 = vld [vmem:[%s1 + $0x5e0] sm:$0xff]
    %v217 = vld [vmem:[%s1 + $0x5e8] sm:$0xff]
    %v218 = vld [vmem:[%s1 + $0x5f0] sm:$0xff]
    %v219 = vld [vmem:[%s1 + $0x5f8] sm:$0xff]
    %v220 = vld [vmem:[%s1 + $0x600] sm:$0xff]
    %v221 = vld [vmem:[%s1 + $0x608] sm:$0xff]
    %v222 = vld [vmem:[%s1 + $0x610] sm:$0xff]
    %v223 = vld [vmem:[%s1 + $0x618] sm:$0xff]
    %v224 = vld [vmem:[%s1 + $0x620] sm:$0xff]
    %v225 = vld [vmem:[%s1 + $0x628] sm:$0xff]
    %v226 = vld [vmem:[%s1 + $0x630] sm:$0xff]
    %v227 = vld [vmem:[%s1 + $0x638] sm:$0xff]
    %v228 = vld [vmem:[%s1 + $0x640] sm:$0xff]
    %v229 = vld [vmem:[%s1 + $0x648] sm:$0xff]
    %v230 = vld [vmem:[%s1 + $0x650] sm:$0xff]
    %v231 = vld [vmem:[%s1 + $0x658] sm:$0xff]
    %v232 = vld [vmem:[%s1 + $0x660] sm:$0xff]
    %v233 = vld [vmem:[%s1 + $0x668] sm:$0xff]
    %v234 = vld [vmem:[%s1 + $0x670] sm:$0xff]
    %v235 = vld [vmem:[%s1 + $0x678] sm:$0xff]
    %v236 = vld [vmem:[%s1 + $0x680] sm:$0xff]
    %v237 = vld [vmem:[%s1 + $0x688] sm:$0xff]
    %v238 = vld [vmem:[%s1 + $0x690] sm:$0xff]
    %v239 = vld [vmem:[%s1 + $0x698] sm:$0xff]
    %v240 = vld [vmem:[%s1 + $0x6a0] sm:$0xff]
    %v241 = vld [vmem:[%s1 + $0x6a8] sm:$0xff]
    %v242 = vld [vmem:[%s1 + $0x6b0] sm:$0xff]
    %v243 = vld [vmem:[%s1 + $0x6b8] sm:$0xff]
    %v244 = vld [vmem:[%s1 + $0x6c0] sm:$0xff]
    %v245 = vld [vmem:[%s1 + $0x6c8] sm:$0xff]
    %v246 = vld [vmem:[%s1 + $0x6d0] sm:$0xff]
    %v247 = vld [vmem:[%s1 + $0x6d8] sm:$0xff]
    %v248 = vld [vmem:[%s1 + $0x6e0] sm:$0xff]
    %v249 = vld [vmem:[%s1 + $0x6e8] sm:$0xff]
    %v250 = vld [vmem:[%s1 + $0x6f0] sm:$0xff]
    %v251 = vld [vmem:[%s1 + $0x6f8] sm:$0xff]
    %v252 = vld [vmem:[%s1 + $0x700] sm:$0xff]
    %v253 = vld [vmem:[%s1 + $0x708] sm:$0xff]
    %v254 = vld [vmem:[%s1 + $0x710] sm:$0xff]
    %v255 = vld [vmem:[%s1 + $0x718] sm:$0xff]
    %v256 = vld [vmem:[%s1 + $0x720] sm:$0xff]
    %v257 = vld [vmem:[%s1 + $0x728] sm:$0xff]
    %v258 = vld [vmem:[%s1 + $0x730] sm:$0xff]
    %v259 = vld [vmem:[%s1 + $0x738] sm:$0xff]
    %v260 = vld [vmem:[%s1 + $0x740] sm:$0xff]
    %v261 = vld [vmem:[%s1 + $0x748] sm:$0xff]
    %v262 = vld [vmem:[%s1 + $0x750] sm:$0xff]
    %v263 = vld [vmem:[%s1 + $0x758] sm:$0xff]
    %v264 = vld [vmem:[%s1 + $0x760] sm:$0xff]
    %v265 = vld [vmem:[%s1 + $0x768] sm:$0xff]
    %v266 = vld [vmem:[%s1 + $0x770] sm:$0xff]
    %v267 = vld [vmem:[%s1 + $0x778] sm:$0xff]
    %v268 = vld [vmem:[%s1 + $0x780] sm:$0xff]
    %v269 = vld [vmem:[%s1 + $0x788] sm:$0xff]
    %v270 = vld [vmem:[%s1 + $0x790] sm:$0xff]
    %v271 = vld [vmem:[%s1 + $0x798] sm:$0xff]
    %v272 = vld [vmem:[%s1 + $0x7a0] sm:$0xff]
    %v273 = vld [vmem:[%s1 + $0x7a8] sm:$0xff]
    %v274 = vld [vmem:[%s1 + $0x7b0] sm:$0xff]
    %v275 = vld [vmem:[%s1 + $0x7b8] sm:$0xff]
    %v276 = vld [vmem:[%s1 + $0x7c0] sm:$0xff]
    %v277 = vld [vmem:[%s1 + $0x7c8] sm:$0xff]
    %v278 = vld [vmem:[%s1 + $0x7d0] sm:$0xff]
    %v279 = vld [vmem:[%s1 + $0x7d8] sm:$0xff]
    %v280 = vld [vmem:[%s1 + $0x7e0] sm:$0xff]
    %v281 = vld [vmem:[%s1 + $0x7e8] sm:$0xff]
    %v282 = vld [vmem:[%s1 + $0x7f0] sm:$0xff]
    %v283 = vld [vmem:[%s1 + $0x7f8] sm:$0xff]
    %v288 = vcombine.high %v24, %v24
    %v290 = vunpack.c.l.s4 1983009808
    %v291 = vunpack.c.0.s8 %v290
    %v292 = vlaneseq
    %v293 = vshrl.u32 %v292, 7
    %v294 = vsub.s32 %v291, %v293
    %v295 = vrot.slane %v24, %v294
    %v297 = vunpack.c.l.s4 1983009808
    %v298 = vunpack.c.0.s8 %v297
    %v299 = vlaneseq
    %v300 = vshrl.u32 %v299, 7
    %v301 = vsub.s32 %v298, %v300
    %v302 = vrot.slane %v288, %v301
    %v303 = vcombine.high %v295, %v295
    %v304 = vcombine.high %v302, %v302
    %v305 = vcombine.high %v25, %v25
    %v307 = vunpack.c.l.s4 1983009808
    %v308 = vunpack.c.0.s8 %v307
    %v309 = vlaneseq
    %v310 = vshrl.u32 %v309, 7
    %v311 = vsub.s32 %v308, %v310
    %v312 = vrot.slane %v25, %v311
    %v314 = vunpack.c.l.s4 1983009808
    %v315 = vunpack.c.0.s8 %v314
    %v316 = vlaneseq
    %v317 = vshrl.u32 %v316, 7
    %v318 = vsub.s32 %v315, %v317
    %v319 = vrot.slane %v305, %v318
    %v320 = vcombine.high %v312, %v312
    %v321 = vcombine.high %v319, %v319
    %v322 = vcombine.high %v26, %v26
    %v324 = vunpack.c.l.s4 1983009808
    %v325 = vunpack.c.0.s8 %v324
    %v326 = vlaneseq
    %v327 = vshrl.u32 %v326, 7
    %v328 = vsub.s32 %v325, %v327
    %v329 = vrot.slane %v26, %v328
    %v331 = vunpack.c.l.s4 1983009808
    %v332 = vunpack.c.0.s8 %v331
    %v333 = vlaneseq
    %v334 = vshrl.u32 %v333, 7
    %v335 = vsub.s32 %v332, %v334
    %v336 = vrot.slane %v322, %v335
    %v337 = vcombine.high %v329, %v329
    %v338 = vcombine.high %v336, %v336
    %v339 = vcombine.high %v27, %v27
    %v341 = vunpack.c.l.s4 1983009808
    %v342 = vunpack.c.0.s8 %v341
    %v343 = vlaneseq
    %v344 = vshrl.u32 %v343, 7
    %v345 = vsub.s32 %v342, %v344
    %v346 = vrot.slane %v27, %v345
    %v348 = vunpack.c.l.s4 1983009808
    %v349 = vunpack.c.0.s8 %v348
    %v350 = vlaneseq
    %v351 = vshrl.u32 %v350, 7
    %v352 = vsub.s32 %v349, %v351
    %v353 = vrot.slane %v339, %v352
    %v354 = vcombine.high %v346, %v346
    %v355 = vcombine.high %v353, %v353
    %372 = vmatprep.subr.mxu0 0.0
    %373 = vmatpush1.msra.mxu0 %v43
    %374 = vmatprep.subr.mxu0 0.0
    %375 = vmatpush1.msra.mxu0 %v42
    %376 = vmatprep.subr.mxu0 0.0
    %377 = vmatpush1.msra.mxu0 %v41
    %378 = vmatprep.subr.mxu0 0.0
    %379 = vmatpush1.msra.mxu0 %v40
    %380 = vmatprep.subr.mxu0 0.0
    %381 = vmatpush1.msra.mxu0 %v39
    %382 = vmatprep.subr.mxu0 0.0
    %383 = vmatpush1.msra.mxu0 %v38
    %384 = vmatprep.subr.mxu0 0.0
    %385 = vmatpush1.msra.mxu0 %v37
    %386 = vmatprep.subr.mxu0 0.0
    %387 = vmatpush1.msra.mxu0 %v36
    %388 = vmatprep.subr.mxu0 0.0
    %389 = vmatpush1.msra.mxu0 %v35
    %390 = vmatprep.subr.mxu0 0.0
    %391 = vmatpush1.msra.mxu0 %v34
    %392 = vmatprep.subr.mxu0 0.0
    %393 = vmatpush1.msra.mxu0 %v33
    %394 = vmatprep.subr.mxu0 0.0
    %395 = vmatpush1.msra.mxu0 %v32
    %396 = vmatprep.subr.mxu0 0.0
    %397 = vmatpush1.msra.mxu0 %v31
    %398 = vmatprep.subr.mxu0 0.0
    %399 = vmatpush1.msra.mxu0 %v30
    %400 = vmatprep.subr.mxu0 0.0
    %401 = vmatpush1.msra.mxu0 %v29
    %402 = vmatprep.subr.mxu0 0.0
    %403 = vmatpush1.msra.mxu0 %v28
    %404 = vmatprep.subr.mxu0 0.0
    %405 = vmatpush2.msra.mxu0 %v59
    %406 = vmatprep.subr.mxu0 0.0
    %407 = vmatpush2.msra.mxu0 %v58
    %408 = vmatprep.subr.mxu0 0.0
    %409 = vmatpush2.msra.mxu0 %v57
    %410 = vmatprep.subr.mxu0 0.0
    %411 = vmatpush2.msra.mxu0 %v56
    %412 = vmatprep.subr.mxu0 0.0
    %413 = vmatpush2.msra.mxu0 %v55
    %414 = vmatprep.subr.mxu0 0.0
    %415 = vmatpush2.msra.mxu0 %v54
    %416 = vmatprep.subr.mxu0 0.0
    %417 = vmatpush2.msra.mxu0 %v53
    %418 = vmatprep.subr.mxu0 0.0
    %419 = vmatpush2.msra.mxu0 %v52
    %420 = vmatprep.subr.mxu0 0.0
    %421 = vmatpush2.msra.mxu0 %v51
    %422 = vmatprep.subr.mxu0 0.0
    %423 = vmatpush2.msra.mxu0 %v50
    %424 = vmatprep.subr.mxu0 0.0
    %425 = vmatpush2.msra.mxu0 %v49
    %426 = vmatprep.subr.mxu0 0.0
    %427 = vmatpush2.msra.mxu0 %v48
    %428 = vmatprep.subr.mxu0 0.0
    %429 = vmatpush2.msra.mxu0 %v47
    %430 = vmatprep.subr.mxu0 0.0
    %431 = vmatpush2.msra.mxu0 %v46
    %432 = vmatprep.subr.mxu0 0.0
    %433 = vmatpush2.msra.mxu0 %v45
    %434 = vmatprep.subr.mxu0 0.0
    %435 = vmatpush2.msra.mxu0 %v44
    %436 = vmatprep.mubr.f32.mxu0 %v303
    %437 = vmatmul.mubr.f32.gmra.mxu0 %v295
    %v438 = vpop.f32.mrf.mxu0
    %v439 = vadd.f32 0.0, %v438
    %v440 = vpop.f32.mrf.mxu0
    %441 = vdwg.mxu0
    %442 = vmatprep.subr.mxu0 0.0
    %443 = vmatpush1.msra.mxu0 %v75
    %444 = vmatprep.subr.mxu0 0.0
    %445 = vmatpush1.msra.mxu0 %v74
    %446 = vmatprep.subr.mxu0 0.0
    %447 = vmatpush1.msra.mxu0 %v73
    %448 = vmatprep.subr.mxu0 0.0
    %449 = vmatpush1.msra.mxu0 %v72
    %450 = vmatprep.subr.mxu0 0.0
    %451 = vmatpush1.msra.mxu0 %v71
    %452 = vmatprep.subr.mxu0 0.0
    %453 = vmatpush1.msra.mxu0 %v70
    %454 = vmatprep.subr.mxu0 0.0
    %455 = vmatpush1.msra.mxu0 %v69
    %456 = vmatprep.subr.mxu0 0.0
    %457 = vmatpush1.msra.mxu0 %v68
    %458 = vmatprep.subr.mxu0 0.0
    %459 = vmatpush1.msra.mxu0 %v67
    %460 = vmatprep.subr.mxu0 0.0
    %461 = vmatpush1.msra.mxu0 %v66
    %462 = vmatprep.subr.mxu0 0.0
    %463 = vmatpush1.msra.mxu0 %v65
    %464 = vmatprep.subr.mxu0 0.0
    %465 = vmatpush1.msra.mxu0 %v64
    %466 = vmatprep.subr.mxu0 0.0
    %467 = vmatpush1.msra.mxu0 %v63
    %468 = vmatprep.subr.mxu0 0.0
    %469 = vmatpush1.msra.mxu0 %v62
    %470 = vmatprep.subr.mxu0 0.0
    %471 = vmatpush1.msra.mxu0 %v61
    %472 = vmatprep.subr.mxu0 0.0
    %473 = vmatpush1.msra.mxu0 %v60
    %474 = vmatprep.subr.mxu0 0.0
    %475 = vmatpush2.msra.mxu0 %v91
    %476 = vmatprep.subr.mxu0 0.0
    %477 = vmatpush2.msra.mxu0 %v90
    %478 = vmatprep.subr.mxu0 0.0
    %479 = vmatpush2.msra.mxu0 %v89
    %480 = vmatprep.subr.mxu0 0.0
    %481 = vmatpush2.msra.mxu0 %v88
    %482 = vmatprep.subr.mxu0 0.0
    %483 = vmatpush2.msra.mxu0 %v87
    %484 = vmatprep.subr.mxu0 0.0
    %485 = vmatpush2.msra.mxu0 %v86
    %486 = vmatprep.subr.mxu0 0.0
    %487 = vmatpush2.msra.mxu0 %v85
    %488 = vmatprep.subr.mxu0 0.0
    %489 = vmatpush2.msra.mxu0 %v84
    %490 = vmatprep.subr.mxu0 0.0
    %491 = vmatpush2.msra.mxu0 %v83
    %492 = vmatprep.subr.mxu0 0.0
    %493 = vmatpush2.msra.mxu0 %v82
    %494 = vmatprep.subr.mxu0 0.0
    %495 = vmatpush2.msra.mxu0 %v81
    %496 = vmatprep.subr.mxu0 0.0
    %497 = vmatpush2.msra.mxu0 %v80
    %498 = vmatprep.subr.mxu0 0.0
    %499 = vmatpush2.msra.mxu0 %v79
    %500 = vmatprep.subr.mxu0 0.0
    %501 = vmatpush2.msra.mxu0 %v78
    %502 = vmatprep.subr.mxu0 0.0
    %503 = vmatpush2.msra.mxu0 %v77
    %504 = vmatprep.subr.mxu0 0.0
    %505 = vmatpush2.msra.mxu0 %v76
    %506 = vmatprep.mubr.f32.mxu0 %v304
    %507 = vmatmul.mubr.f32.gmra.mxu0 %v302
    %v508 = vpop.f32.mrf.mxu0
    %v509 = vadd.f32 %v439, %v508
    %v510 = vpop.f32.mrf.mxu0
    %511 = vdwg.mxu0
    %512 = vmatprep.subr.mxu0 0.0
    %513 = vmatpush1.msra.mxu0 %v107
    %514 = vmatprep.subr.mxu0 0.0
    %515 = vmatpush1.msra.mxu0 %v106
    %516 = vmatprep.subr.mxu0 0.0
    %517 = vmatpush1.msra.mxu0 %v105
    %518 = vmatprep.subr.mxu0 0.0
    %519 = vmatpush1.msra.mxu0 %v104
    %520 = vmatprep.subr.mxu0 0.0
    %521 = vmatpush1.msra.mxu0 %v103
    %522 = vmatprep.subr.mxu0 0.0
    %523 = vmatpush1.msra.mxu0 %v102
    %524 = vmatprep.subr.mxu0 0.0
    %525 = vmatpush1.msra.mxu0 %v101
    %526 = vmatprep.subr.mxu0 0.0
    %527 = vmatpush1.msra.mxu0 %v100
    %528 = vmatprep.subr.mxu0 0.0
    %529 = vmatpush1.msra.mxu0 %v99
    %530 = vmatprep.subr.mxu0 0.0
    %531 = vmatpush1.msra.mxu0 %v98
    %532 = vmatprep.subr.mxu0 0.0
    %533 = vmatpush1.msra.mxu0 %v97
    %534 = vmatprep.subr.mxu0 0.0
    %535 = vmatpush1.msra.mxu0 %v96
    %536 = vmatprep.subr.mxu0 0.0
    %537 = vmatpush1.msra.mxu0 %v95
    %538 = vmatprep.subr.mxu0 0.0
    %539 = vmatpush1.msra.mxu0 %v94
    %540 = vmatprep.subr.mxu0 0.0
    %541 = vmatpush1.msra.mxu0 %v93
    %542 = vmatprep.subr.mxu0 0.0
    %543 = vmatpush1.msra.mxu0 %v92
    %544 = vmatprep.subr.mxu0 0.0
    %545 = vmatpush2.msra.mxu0 %v123
    %546 = vmatprep.subr.mxu0 0.0
    %547 = vmatpush2.msra.mxu0 %v122
    %548 = vmatprep.subr.mxu0 0.0
    %549 = vmatpush2.msra.mxu0 %v121
    %550 = vmatprep.subr.mxu0 0.0
    %551 = vmatpush2.msra.mxu0 %v120
    %552 = vmatprep.subr.mxu0 0.0
    %553 = vmatpush2.msra.mxu0 %v119
    %554 = vmatprep.subr.mxu0 0.0
    %555 = vmatpush2.msra.mxu0 %v118
    %556 = vmatprep.subr.mxu0 0.0
    %557 = vmatpush2.msra.mxu0 %v117
    %558 = vmatprep.subr.mxu0 0.0
    %559 = vmatpush2.msra.mxu0 %v116
    %560 = vmatprep.subr.mxu0 0.0
    %561 = vmatpush2.msra.mxu0 %v115
    %562 = vmatprep.subr.mxu0 0.0
    %563 = vmatpush2.msra.mxu0 %v114
    %564 = vmatprep.subr.mxu0 0.0
    %565 = vmatpush2.msra.mxu0 %v113
    %566 = vmatprep.subr.mxu0 0.0
    %567 = vmatpush2.msra.mxu0 %v112
    %568 = vmatprep.subr.mxu0 0.0
    %569 = vmatpush2.msra.mxu0 %v111
    %570 = vmatprep.subr.mxu0 0.0
    %571 = vmatpush2.msra.mxu0 %v110
    %572 = vmatprep.subr.mxu0 0.0
    %573 = vmatpush2.msra.mxu0 %v109
    %574 = vmatprep.subr.mxu0 0.0
    %575 = vmatpush2.msra.mxu0 %v108
    %576 = vmatprep.mubr.f32.mxu0 %v320
    %577 = vmatmul.mubr.f32.gmra.mxu0 %v312
    %v578 = vpop.f32.mrf.mxu0
    %v579 = vadd.f32 %v509, %v578
    %v580 = vpop.f32.mrf.mxu0
    %581 = vdwg.mxu0
    %582 = vmatprep.subr.mxu0 0.0
    %583 = vmatpush1.msra.mxu0 %v139
    %584 = vmatprep.subr.mxu0 0.0
    %585 = vmatpush1.msra.mxu0 %v138
    %586 = vmatprep.subr.mxu0 0.0
    %587 = vmatpush1.msra.mxu0 %v137
    %588 = vmatprep.subr.mxu0 0.0
    %589 = vmatpush1.msra.mxu0 %v136
    %590 = vmatprep.subr.mxu0 0.0
    %591 = vmatpush1.msra.mxu0 %v135
    %592 = vmatprep.subr.mxu0 0.0
    %593 = vmatpush1.msra.mxu0 %v134
    %594 = vmatprep.subr.mxu0 0.0
    %595 = vmatpush1.msra.mxu0 %v133
    %596 = vmatprep.subr.mxu0 0.0
    %597 = vmatpush1.msra.mxu0 %v132
    %598 = vmatprep.subr.mxu0 0.0
    %599 = vmatpush1.msra.mxu0 %v131
    %600 = vmatprep.subr.mxu0 0.0
    %601 = vmatpush1.msra.mxu0 %v130
    %602 = vmatprep.subr.mxu0 0.0
    %603 = vmatpush1.msra.mxu0 %v129
    %604 = vmatprep.subr.mxu0 0.0
    %605 = vmatpush1.msra.mxu0 %v128
    %606 = vmatprep.subr.mxu0 0.0
    %607 = vmatpush1.msra.mxu0 %v127
    %608 = vmatprep.subr.mxu0 0.0
    %609 = vmatpush1.msra.mxu0 %v126
    %610 = vmatprep.subr.mxu0 0.0
    %611 = vmatpush1.msra.mxu0 %v125
    %612 = vmatprep.subr.mxu0 0.0
    %613 = vmatpush1.msra.mxu0 %v124
    %614 = vmatprep.subr.mxu0 0.0
    %615 = vmatpush2.msra.mxu0 %v155
    %616 = vmatprep.subr.mxu0 0.0
    %617 = vmatpush2.msra.mxu0 %v154
    %618 = vmatprep.subr.mxu0 0.0
    %619 = vmatpush2.msra.mxu0 %v153
    %620 = vmatprep.subr.mxu0 0.0
    %621 = vmatpush2.msra.mxu0 %v152
    %622 = vmatprep.subr.mxu0 0.0
    %623 = vmatpush2.msra.mxu0 %v151
    %624 = vmatprep.subr.mxu0 0.0
    %625 = vmatpush2.msra.mxu0 %v150
    %626 = vmatprep.subr.mxu0 0.0
    %627 = vmatpush2.msra.mxu0 %v149
    %628 = vmatprep.subr.mxu0 0.0
    %629 = vmatpush2.msra.mxu0 %v148
    %630 = vmatprep.subr.mxu0 0.0
    %631 = vmatpush2.msra.mxu0 %v147
    %632 = vmatprep.subr.mxu0 0.0
    %633 = vmatpush2.msra.mxu0 %v146
    %634 = vmatprep.subr.mxu0 0.0
    %635 = vmatpush2.msra.mxu0 %v145
    %636 = vmatprep.subr.mxu0 0.0
    %637 = vmatpush2.msra.mxu0 %v144
    %638 = vmatprep.subr.mxu0 0.0
    %639 = vmatpush2.msra.mxu0 %v143
    %640 = vmatprep.subr.mxu0 0.0
    %641 = vmatpush2.msra.mxu0 %v142
    %642 = vmatprep.subr.mxu0 0.0
    %643 = vmatpush2.msra.mxu0 %v141
    %644 = vmatprep.subr.mxu0 0.0
    %645 = vmatpush2.msra.mxu0 %v140
    %646 = vmatprep.mubr.f32.mxu0 %v321
    %647 = vmatmul.mubr.f32.gmra.mxu0 %v319
    %v648 = vpop.f32.mrf.mxu0
    %v649 = vadd.f32 %v579, %v648
    %v650 = vpop.f32.mrf.mxu0
    %651 = vdwg.mxu0
    %652 = vmatprep.subr.mxu0 0.0
    %653 = vmatpush1.msra.mxu0 %v171
    %654 = vmatprep.subr.mxu0 0.0
    %655 = vmatpush1.msra.mxu0 %v170
    %656 = vmatprep.subr.mxu0 0.0
    %657 = vmatpush1.msra.mxu0 %v169
    %658 = vmatprep.subr.mxu0 0.0
    %659 = vmatpush1.msra.mxu0 %v168
    %660 = vmatprep.subr.mxu0 0.0
    %661 = vmatpush1.msra.mxu0 %v167
    %662 = vmatprep.subr.mxu0 0.0
    %663 = vmatpush1.msra.mxu0 %v166
    %664 = vmatprep.subr.mxu0 0.0
    %665 = vmatpush1.msra.mxu0 %v165
    %666 = vmatprep.subr.mxu0 0.0
    %667 = vmatpush1.msra.mxu0 %v164
    %668 = vmatprep.subr.mxu0 0.0
    %669 = vmatpush1.msra.mxu0 %v163
    %670 = vmatprep.subr.mxu0 0.0
    %671 = vmatpush1.msra.mxu0 %v162
    %672 = vmatprep.subr.mxu0 0.0
    %673 = vmatpush1.msra.mxu0 %v161
    %674 = vmatprep.subr.mxu0 0.0
    %675 = vmatpush1.msra.mxu0 %v160
    %676 = vmatprep.subr.mxu0 0.0
    %677 = vmatpush1.msra.mxu0 %v159
    %678 = vmatprep.subr.mxu0 0.0
    %679 = vmatpush1.msra.mxu0 %v158
    %680 = vmatprep.subr.mxu0 0.0
    %681 = vmatpush1.msra.mxu0 %v157
    %682 = vmatprep.subr.mxu0 0.0
    %683 = vmatpush1.msra.mxu0 %v156
    %684 = vmatprep.subr.mxu0 0.0
    %685 = vmatpush2.msra.mxu0 %v187
    %686 = vmatprep.subr.mxu0 0.0
    %687 = vmatpush2.msra.mxu0 %v186
    %688 = vmatprep.subr.mxu0 0.0
    %689 = vmatpush2.msra.mxu0 %v185
    %690 = vmatprep.subr.mxu0 0.0
    %691 = vmatpush2.msra.mxu0 %v184
    %692 = vmatprep.subr.mxu0 0.0
    %693 = vmatpush2.msra.mxu0 %v183
    %694 = vmatprep.subr.mxu0 0.0
    %695 = vmatpush2.msra.mxu0 %v182
    %696 = vmatprep.subr.mxu0 0.0
    %697 = vmatpush2.msra.mxu0 %v181
    %698 = vmatprep.subr.mxu0 0.0
    %699 = vmatpush2.msra.mxu0 %v180
    %700 = vmatprep.subr.mxu0 0.0
    %701 = vmatpush2.msra.mxu0 %v179
    %702 = vmatprep.subr.mxu0 0.0
    %703 = vmatpush2.msra.mxu0 %v178
    %704 = vmatprep.subr.mxu0 0.0
    %705 = vmatpush2.msra.mxu0 %v177
    %706 = vmatprep.subr.mxu0 0.0
    %707 = vmatpush2.msra.mxu0 %v176
    %708 = vmatprep.subr.mxu0 0.0
    %709 = vmatpush2.msra.mxu0 %v175
    %710 = vmatprep.subr.mxu0 0.0
    %711 = vmatpush2.msra.mxu0 %v174
    %712 = vmatprep.subr.mxu0 0.0
    %713 = vmatpush2.msra.mxu0 %v173
    %714 = vmatprep.subr.mxu0 0.0
    %715 = vmatpush2.msra.mxu0 %v172
    %716 = vmatprep.mubr.f32.mxu0 %v337
    %717 = vmatmul.mubr.f32.gmra.mxu0 %v329
    %v718 = vpop.f32.mrf.mxu0
    %v719 = vadd.f32 %v649, %v718
    %v720 = vpop.f32.mrf.mxu0
    %721 = vdwg.mxu0
    %722 = vmatprep.subr.mxu0 0.0
    %723 = vmatpush1.msra.mxu0 %v203
    %724 = vmatprep.subr.mxu0 0.0
    %725 = vmatpush1.msra.mxu0 %v202
    %726 = vmatprep.subr.mxu0 0.0
    %727 = vmatpush1.msra.mxu0 %v201
    %728 = vmatprep.subr.mxu0 0.0
    %729 = vmatpush1.msra.mxu0 %v200
    %730 = vmatprep.subr.mxu0 0.0
    %731 = vmatpush1.msra.mxu0 %v199
    %732 = vmatprep.subr.mxu0 0.0
    %733 = vmatpush1.msra.mxu0 %v198
    %734 = vmatprep.subr.mxu0 0.0
    %735 = vmatpush1.msra.mxu0 %v197
    %736 = vmatprep.subr.mxu0 0.0
    %737 = vmatpush1.msra.mxu0 %v196
    %738 = vmatprep.subr.mxu0 0.0
    %739 = vmatpush1.msra.mxu0 %v195
    %740 = vmatprep.subr.mxu0 0.0
    %741 = vmatpush1.msra.mxu0 %v194
    %742 = vmatprep.subr.mxu0 0.0
    %743 = vmatpush1.msra.mxu0 %v193
    %744 = vmatprep.subr.mxu0 0.0
    %745 = vmatpush1.msra.mxu0 %v192
    %746 = vmatprep.subr.mxu0 0.0
    %747 = vmatpush1.msra.mxu0 %v191
    %748 = vmatprep.subr.mxu0 0.0
    %749 = vmatpush1.msra.mxu0 %v190
    %750 = vmatprep.subr.mxu0 0.0
    %751 = vmatpush1.msra.mxu0 %v189
    %752 = vmatprep.subr.mxu0 0.0
    %753 = vmatpush1.msra.mxu0 %v188
    %754 = vmatprep.subr.mxu0 0.0
    %755 = vmatpush2.msra.mxu0 %v219
    %756 = vmatprep.subr.mxu0 0.0
    %757 = vmatpush2.msra.mxu0 %v218
    %758 = vmatprep.subr.mxu0 0.0
    %759 = vmatpush2.msra.mxu0 %v217
    %760 = vmatprep.subr.mxu0 0.0
    %761 = vmatpush2.msra.mxu0 %v216
    %762 = vmatprep.subr.mxu0 0.0
    %763 = vmatpush2.msra.mxu0 %v215
    %764 = vmatprep.subr.mxu0 0.0
    %765 = vmatpush2.msra.mxu0 %v214
    %766 = vmatprep.subr.mxu0 0.0
    %767 = vmatpush2.msra.mxu0 %v213
    %768 = vmatprep.subr.mxu0 0.0
    %769 = vmatpush2.msra.mxu0 %v212
    %770 = vmatprep.subr.mxu0 0.0
    %771 = vmatpush2.msra.mxu0 %v211
    %772 = vmatprep.subr.mxu0 0.0
    %773 = vmatpush2.msra.mxu0 %v210
    %774 = vmatprep.subr.mxu0 0.0
    %775 = vmatpush2.msra.mxu0 %v209
    %776 = vmatprep.subr.mxu0 0.0
    %777 = vmatpush2.msra.mxu0 %v208
    %778 = vmatprep.subr.mxu0 0.0
    %779 = vmatpush2.msra.mxu0 %v207
    %780 = vmatprep.subr.mxu0 0.0
    %781 = vmatpush2.msra.mxu0 %v206
    %782 = vmatprep.subr.mxu0 0.0
    %783 = vmatpush2.msra.mxu0 %v205
    %784 = vmatprep.subr.mxu0 0.0
    %785 = vmatpush2.msra.mxu0 %v204
    %786 = vmatprep.mubr.f32.mxu0 %v338
    %787 = vmatmul.mubr.f32.gmra.mxu0 %v336
    %v788 = vpop.f32.mrf.mxu0
    %v789 = vadd.f32 %v719, %v788
    %v790 = vpop.f32.mrf.mxu0
    %791 = vdwg.mxu0
    %792 = vmatprep.subr.mxu0 0.0
    %793 = vmatpush1.msra.mxu0 %v235
    %794 = vmatprep.subr.mxu0 0.0
    %795 = vmatpush1.msra.mxu0 %v234
    %796 = vmatprep.subr.mxu0 0.0
    %797 = vmatpush1.msra.mxu0 %v233
    %798 = vmatprep.subr.mxu0 0.0
    %799 = vmatpush1.msra.mxu0 %v232
    %800 = vmatprep.subr.mxu0 0.0
    %801 = vmatpush1.msra.mxu0 %v231
    %802 = vmatprep.subr.mxu0 0.0
    %803 = vmatpush1.msra.mxu0 %v230
    %804 = vmatprep.subr.mxu0 0.0
    %805 = vmatpush1.msra.mxu0 %v229
    %806 = vmatprep.subr.mxu0 0.0
    %807 = vmatpush1.msra.mxu0 %v228
    %808 = vmatprep.subr.mxu0 0.0
    %809 = vmatpush1.msra.mxu0 %v227
    %810 = vmatprep.subr.mxu0 0.0
    %811 = vmatpush1.msra.mxu0 %v226
    %812 = vmatprep.subr.mxu0 0.0
    %813 = vmatpush1.msra.mxu0 %v225
    %814 = vmatprep.subr.mxu0 0.0
    %815 = vmatpush1.msra.mxu0 %v224
    %816 = vmatprep.subr.mxu0 0.0
    %817 = vmatpush1.msra.mxu0 %v223
    %818 = vmatprep.subr.mxu0 0.0
    %819 = vmatpush1.msra.mxu0 %v222
    %820 = vmatprep.subr.mxu0 0.0
    %821 = vmatpush1.msra.mxu0 %v221
    %822 = vmatprep.subr.mxu0 0.0
    %823 = vmatpush1.msra.mxu0 %v220
    %824 = vmatprep.subr.mxu0 0.0
    %825 = vmatpush2.msra.mxu0 %v251
    %826 = vmatprep.subr.mxu0 0.0
    %827 = vmatpush2.msra.mxu0 %v250
    %828 = vmatprep.subr.mxu0 0.0
    %829 = vmatpush2.msra.mxu0 %v249
    %830 = vmatprep.subr.mxu0 0.0
    %831 = vmatpush2.msra.mxu0 %v248
    %832 = vmatprep.subr.mxu0 0.0
    %833 = vmatpush2.msra.mxu0 %v247
    %834 = vmatprep.subr.mxu0 0.0
    %835 = vmatpush2.msra.mxu0 %v246
    %836 = vmatprep.subr.mxu0 0.0
    %837 = vmatpush2.msra.mxu0 %v245
    %838 = vmatprep.subr.mxu0 0.0
    %839 = vmatpush2.msra.mxu0 %v244
    %840 = vmatprep.subr.mxu0 0.0
    %841 = vmatpush2.msra.mxu0 %v243
    %842 = vmatprep.subr.mxu0 0.0
    %843 = vmatpush2.msra.mxu0 %v242
    %844 = vmatprep.subr.mxu0 0.0
    %845 = vmatpush2.msra.mxu0 %v241
    %846 = vmatprep.subr.mxu0 0.0
    %847 = vmatpush2.msra.mxu0 %v240
    %848 = vmatprep.subr.mxu0 0.0
    %849 = vmatpush2.msra.mxu0 %v239
    %850 = vmatprep.subr.mxu0 0.0
    %851 = vmatpush2.msra.mxu0 %v238
    %852 = vmatprep.subr.mxu0 0.0
    %853 = vmatpush2.msra.mxu0 %v237
    %854 = vmatprep.subr.mxu0 0.0
    %855 = vmatpush2.msra.mxu0 %v236
    %856 = vmatprep.mubr.f32.mxu0 %v354
    %857 = vmatmul.mubr.f32.gmra.mxu0 %v346
    %v858 = vpop.f32.mrf.mxu0
    %v859 = vadd.f32 %v789, %v858
    %v860 = vpop.f32.mrf.mxu0
    %861 = vdwg.mxu0
    %862 = vmatprep.subr.mxu0 0.0
    %863 = vmatpush1.msra.mxu0 %v267
    %864 = vmatprep.subr.mxu0 0.0
    %865 = vmatpush1.msra.mxu0 %v266
    %866 = vmatprep.subr.mxu0 0.0
    %867 = vmatpush1.msra.mxu0 %v265
    %868 = vmatprep.subr.mxu0 0.0
    %869 = vmatpush1.msra.mxu0 %v264
    %870 = vmatprep.subr.mxu0 0.0
    %871 = vmatpush1.msra.mxu0 %v263
    %872 = vmatprep.subr.mxu0 0.0
    %873 = vmatpush1.msra.mxu0 %v262
    %874 = vmatprep.subr.mxu0 0.0
    %875 = vmatpush1.msra.mxu0 %v261
    %876 = vmatprep.subr.mxu0 0.0
    %877 = vmatpush1.msra.mxu0 %v260
    %878 = vmatprep.subr.mxu0 0.0
    %879 = vmatpush1.msra.mxu0 %v259
    %880 = vmatprep.subr.mxu0 0.0
    %881 = vmatpush1.msra.mxu0 %v258
    %882 = vmatprep.subr.mxu0 0.0
    %883 = vmatpush1.msra.mxu0 %v257
    %884 = vmatprep.subr.mxu0 0.0
    %885 = vmatpush1.msra.mxu0 %v256
    %886 = vmatprep.subr.mxu0 0.0
    %887 = vmatpush1.msra.mxu0 %v255
    %888 = vmatprep.subr.mxu0 0.0
    %889 = vmatpush1.msra.mxu0 %v254
    %890 = vmatprep.subr.mxu0 0.0
    %891 = vmatpush1.msra.mxu0 %v253
    %892 = vmatprep.subr.mxu0 0.0
    %893 = vmatpush1.msra.mxu0 %v252
    %894 = vmatprep.subr.mxu0 0.0
    %895 = vmatpush2.msra.mxu0 %v283
    %896 = vmatprep.subr.mxu0 0.0
    %897 = vmatpush2.msra.mxu0 %v282
    %898 = vmatprep.subr.mxu0 0.0
    %899 = vmatpush2.msra.mxu0 %v281
    %900 = vmatprep.subr.mxu0 0.0
    %901 = vmatpush2.msra.mxu0 %v280
    %902 = vmatprep.subr.mxu0 0.0
    %903 = vmatpush2.msra.mxu0 %v279
    %904 = vmatprep.subr.mxu0 0.0
    %905 = vmatpush2.msra.mxu0 %v278
    %906 = vmatprep.subr.mxu0 0.0
    %907 = vmatpush2.msra.mxu0 %v277
    %908 = vmatprep.subr.mxu0 0.0
    %909 = vmatpush2.msra.mxu0 %v276
    %910 = vmatprep.subr.mxu0 0.0
    %911 = vmatpush2.msra.mxu0 %v275
    %912 = vmatprep.subr.mxu0 0.0
    %913 = vmatpush2.msra.mxu0 %v274
    %914 = vmatprep.subr.mxu0 0.0
    %915 = vmatpush2.msra.mxu0 %v273
    %916 = vmatprep.subr.mxu0 0.0
    %917 = vmatpush2.msra.mxu0 %v272
    %918 = vmatprep.subr.mxu0 0.0
    %919 = vmatpush2.msra.mxu0 %v271
    %920 = vmatprep.subr.mxu0 0.0
    %921 = vmatpush2.msra.mxu0 %v270
    %922 = vmatprep.subr.mxu0 0.0
    %923 = vmatpush2.msra.mxu0 %v269
    %924 = vmatprep.subr.mxu0 0.0
    %925 = vmatpush2.msra.mxu0 %v268
    %926 = vmatprep.mubr.f32.mxu0 %v355
    %927 = vmatmul.mubr.f32.gmra.mxu0 %v353
    %v928 = vpop.f32.mrf.mxu0
    %v929 = vadd.f32 %v859, %v928
    %v930 = vpop.f32.mrf.mxu0
    %931 = vdwg.mxu0
    %v932 = vmul.f32 %v929, 0.015625
    %v933 = vld [vmem:[%s2] sm:$0xff]
    %v934 = vld [vmem:[%s2 + $0x8] sm:$0xff]
    %v935 = vld [vmem:[%s2 + $0x10] sm:$0xff]
    %v936 = vld [vmem:[%s2 + $0x18] sm:$0xff]
    %v937 = vld [vmem:[%s3] sm:$0x1]
    %v939 = vlaneseq
    %v940 = vshrl.u32 %v939, 7
    %v941 = vsub.s32 0, %v940
    %v942 = vrot.slane %v937, %v941
    %vm944 = vcmask 261120
    %v946 = vsel %vm944, %v932, 0
    %948 = vmatprep.subr.mxu0 0.0
    %949 = vmatpush1.msra.mxu0 0.0
    %950 = vmatprep.subr.mxu0 0.0
    %951 = vmatpush1.msra.mxu0 0.0
    %952 = vmatprep.subr.mxu0 0.0
    %953 = vmatpush1.msra.mxu0 0.0
    %954 = vmatprep.subr.mxu0 0.0
    %955 = vmatpush1.msra.mxu0 0.0
    %956 = vmatprep.subr.mxu0 0.0
    %957 = vmatpush1.msra.mxu0 0.0
    %958 = vmatprep.subr.mxu0 0.0
    %959 = vmatpush1.msra.mxu0 0.0
    %960 = vmatprep.subr.mxu0 0.0
    %961 = vmatpush1.msra.mxu0 0.0
    %962 = vmatprep.subr.mxu0 0.0
    %963 = vmatpush1.msra.mxu0 0.0
    %964 = vmatprep.subr.mxu0 0.0
    %965 = vmatpush1.msra.mxu0 0.0
    %966 = vmatprep.subr.mxu0 0.0
    %967 = vmatpush1.msra.mxu0 0.0
    %968 = vmatprep.subr.mxu0 0.0
    %969 = vmatpush1.msra.mxu0 0.0
    %970 = vmatprep.subr.mxu0 0.0
    %971 = vmatpush1.msra.mxu0 0.0
    %972 = vmatprep.subr.mxu0 0.0
    %973 = vmatpush1.msra.mxu0 %v936
    %974 = vmatprep.subr.mxu0 0.0
    %975 = vmatpush1.msra.mxu0 %v935
    %976 = vmatprep.subr.mxu0 0.0
    %977 = vmatpush1.msra.mxu0 %v934
    %978 = vmatprep.subr.mxu0 0.0
    %979 = vmatpush1.msra.mxu0 %v933
    %980 = vmatprep.subr.mxu0 0.0
    %981 = vmatpush2.msra.mxu0 0.0
    %982 = vmatprep.subr.mxu0 0.0
    %983 = vmatpush2.msra.mxu0 0.0
    %984 = vmatprep.subr.mxu0 0.0
    %985 = vmatpush2.msra.mxu0 0.0
    %986 = vmatprep.subr.mxu0 0.0
    %987 = vmatpush2.msra.mxu0 0.0
    %988 = vmatprep.subr.mxu0 0.0
    %989 = vmatpush2.msra.mxu0 0.0
    %990 = vmatprep.subr.mxu0 0.0
    %991 = vmatpush2.msra.mxu0 0.0
    %992 = vmatprep.subr.mxu0 0.0
    %993 = vmatpush2.msra.mxu0 0.0
    %994 = vmatprep.subr.mxu0 0.0
    %995 = vmatpush2.msra.mxu0 0.0
    %996 = vmatprep.subr.mxu0 0.0
    %997 = vmatpush2.msra.mxu0 0.0
    %998 = vmatprep.subr.mxu0 0.0
    %999 = vmatpush2.msra.mxu0 0.0
    %1000 = vmatprep.subr.mxu0 0.0
    %1001 = vmatpush2.msra.mxu0 0.0
    %1002 = vmatprep.subr.mxu0 0.0
    %1003 = vmatpush2.msra.mxu0 0.0
    %1004 = vmatprep.subr.mxu0 0.0
    %1005 = vmatpush2.msra.mxu0 0.0
    %1006 = vmatprep.subr.mxu0 0.0
    %1007 = vmatpush2.msra.mxu0 0.0
    %1008 = vmatprep.subr.mxu0 0.0
    %1009 = vmatpush2.msra.mxu0 0.0
    %1010 = vmatprep.subr.mxu0 0.0
    %1011 = vmatpush2.msra.mxu0 0.0
    %1012 = vmatprep.mubr.f32.mxu0 0.0
    %1013 = vmatmul.mubr.f32.gmra.mxu0 %v946
    %v1014 = vpop.f32.mrf.mxu0
    %v1015 = vadd.f32 %v942, %v1014
    %v1016 = vpop.f32.mrf.mxu0
    %1017 = vdwg.mxu0
    %v1018 = vmax.f32 %v1015, 0.0
    %v1019 = vld [vmem:[%s4] sm:$0xff]
    %v1020 = vld [vmem:[%s5] sm:$0x1]
    %v1022 = vlaneseq
    %v1023 = vshrl.u32 %v1022, 7
    %v1024 = vsub.s32 0, %v1023
    %v1025 = vrot.slane %v1020, %v1024
    %vm1027 = vcmask 64512
    %v1029 = vsel %vm1027, %v1018, 0
    %1031 = vmatprep.subr.mxu0 0.0
    %1032 = vmatpush1.msra.mxu0 0.0
    %1033 = vmatprep.subr.mxu0 0.0
    %1034 = vmatpush1.msra.mxu0 0.0
    %1035 = vmatprep.subr.mxu0 0.0
    %1036 = vmatpush1.msra.mxu0 0.0
    %1037 = vmatprep.subr.mxu0 0.0
    %1038 = vmatpush1.msra.mxu0 0.0
    %1039 = vmatprep.subr.mxu0 0.0
    %1040 = vmatpush1.msra.mxu0 0.0
    %1041 = vmatprep.subr.mxu0 0.0
    %1042 = vmatpush1.msra.mxu0 0.0
    %1043 = vmatprep.subr.mxu0 0.0
    %1044 = vmatpush1.msra.mxu0 0.0
    %1045 = vmatprep.subr.mxu0 0.0
    %1046 = vmatpush1.msra.mxu0 0.0
    %1047 = vmatprep.subr.mxu0 0.0
    %1048 = vmatpush1.msra.mxu0 0.0
    %1049 = vmatprep.subr.mxu0 0.0
    %1050 = vmatpush1.msra.mxu0 0.0
    %1051 = vmatprep.subr.mxu0 0.0
    %1052 = vmatpush1.msra.mxu0 0.0
    %1053 = vmatprep.subr.mxu0 0.0
    %1054 = vmatpush1.msra.mxu0 0.0
    %1055 = vmatprep.subr.mxu0 0.0
    %1056 = vmatpush1.msra.mxu0 0.0
    %1057 = vmatprep.subr.mxu0 0.0
    %1058 = vmatpush1.msra.mxu0 0.0
    %1059 = vmatprep.subr.mxu0 0.0
    %1060 = vmatpush1.msra.mxu0 0.0
    %1061 = vmatprep.subr.mxu0 0.0
    %1062 = vmatpush1.msra.mxu0 %v1019
    %1063 = vmatprep.subr.mxu0 0.0
    %1064 = vmatpush2.msra.mxu0 0.0
    %1065 = vmatprep.subr.mxu0 0.0
    %1066 = vmatpush2.msra.mxu0 0.0
    %1067 = vmatprep.subr.mxu0 0.0
    %1068 = vmatpush2.msra.mxu0 0.0
    %1069 = vmatprep.subr.mxu0 0.0
    %1070 = vmatpush2.msra.mxu0 0.0
    %1071 = vmatprep.subr.mxu0 0.0
    %1072 = vmatpush2.msra.mxu0 0.0
    %1073 = vmatprep.subr.mxu0 0.0
    %1074 = vmatpush2.msra.mxu0 0.0
    %1075 = vmatprep.subr.mxu0 0.0
    %1076 = vmatpush2.msra.mxu0 0.0
    %1077 = vmatprep.subr.mxu0 0.0
    %1078 = vmatpush2.msra.mxu0 0.0
    %1079 = vmatprep.subr.mxu0 0.0
    %1080 = vmatpush2.msra.mxu0 0.0
    %1081 = vmatprep.subr.mxu0 0.0
    %1082 = vmatpush2.msra.mxu0 0.0
    %1083 = vmatprep.subr.mxu0 0.0
    %1084 = vmatpush2.msra.mxu0 0.0
    %1085 = vmatprep.subr.mxu0 0.0
    %1086 = vmatpush2.msra.mxu0 0.0
    %1087 = vmatprep.subr.mxu0 0.0
    %1088 = vmatpush2.msra.mxu0 0.0
    %1089 = vmatprep.subr.mxu0 0.0
    %1090 = vmatpush2.msra.mxu0 0.0
    %1091 = vmatprep.subr.mxu0 0.0
    %1092 = vmatpush2.msra.mxu0 0.0
    %1093 = vmatprep.subr.mxu0 0.0
    %1094 = vmatpush2.msra.mxu0 0.0
    %1095 = vmatprep.mubr.f32.mxu0 0.0
    %1096 = vmatmul.mubr.f32.gmra.mxu0 %v1029
    %v1097 = vpop.f32.mrf.mxu0
    %v1098 = vadd.f32 %v1025, %v1097
    %v1099 = vpop.f32.mrf.mxu0
    %1100 = vdwg.mxu0
    %v1101 = vxor.u32 %v1098, 2147483648
    %v1102 = vmul.f32 %v1101, 1.442695
    %v1103 = vpow.pop %v1102
    %v1104 = vadd.f32 %v1103, 1.0
    %v1105 = vrcp.pop %v1104
    %v1106 = vmul.f32 1.0, %v1105
    %vm1107 = vcmask 254976
    %1108 = vst.msk [vmem:[#allocation2] sm:$0x3] %vm1107, %v1106
    // Predicated region
    $region26: #{se_block_forward.1} parent=1 // pred_check
      _
    $region27: #{se_block_forward.1} parent=1 // pred_check_branch
      %1110 = sbr.rel (0) target = $region29
    $region28: #{se_block_forward.1} parent=1 // pred_region
      %s1112 = ssub.s32 32, 32
      %1113 = vsyncadd [#allocation3], %s1112
      %s1115 = sshll.u32 [#allocation2], 4
      %s1116 = int_to_ptr.vmem [resolvable:$true] %s1115
      %1118 = dma.vmem_to_hbm [thread:$0]  %s1116, 32, %s6, [#allocation3]
    $region29: #{se_block_forward.1} parent=1 // pred_fallthru
      _
    // Predicated region
    $region30: #{se_block_forward.1} parent=1 // pred_check
      _
    $region31: #{se_block_forward.1} parent=1 // pred_check_branch
      %1120 = sbr.rel (0) target = $region33
    $region32: #{se_block_forward.1} parent=1 // pred_region
      %1121 = dma.done [#allocation3], 32
    $region33: #{se_block_forward.1} parent=1 // pred_fallthru
      _
    %1122 = vsyncpa [#allocation3], 1

</llo_original>
